<compile_context>
chip_gen: v5e
topology: v5e:2x2
jax: 0.10.0
libtpu: 0.0.40
codegen_flags: <defaults>
</compile_context>

<pallas_src>
import jax
import jax.numpy as jnp
from jax.experimental import pallas as pl
from jax.experimental.pallas import tpu as pltpu

_LANE = 128
_OUT_FEATURES = 52 * 4  # 208


def _round_up(v, m):
    return (v + m - 1) // m * m


def _make_mlp_kernel(num_linear_layers):
    """Fused MLP kernel: refs = (x, w1, b1, ..., wL, bL, out)."""

    def kernel(*refs):
        x_ref = refs[0]
        o_ref = refs[-1]
        param_refs = refs[1:-1]
        assert len(param_refs) == 2 * num_linear_layers

        # bf16 matmul inputs, f32 accumulation (native MXU rate on v5e/v6e/v7x).
        h = x_ref[...].astype(jnp.bfloat16)
        for i in range(num_linear_layers):
            w = param_refs[2 * i][...]        # bf16, already lane-padded
            b = param_refs[2 * i + 1][...]    # f32, (1, out_pad) broadcasts over rows
            acc = jnp.dot(h, w, preferred_element_type=jnp.float32) + b
            if i < num_linear_layers - 1:
                # bias-add + ReLU in f32, then shrink the live intermediate to
                # bf16 to keep vreg pressure low at large batch tiles.
                h = jnp.maximum(acc, 0.0).astype(jnp.bfloat16)
            else:
                h = acc                        # no ReLU on the final layer
        o_ref[...] = h.astype(o_ref.dtype)

    return kernel


def cardnet_forward(x, params, *, batch_tile=256):
    """CardNet MLP via a single fused Pallas kernel, tiled over the batch.

    x:      (B, input_size) float32
    params: list of (W, b); W is (in_features, out_features), b is (1, out_features) or (out_features,)
    Returns (B, 52*4) float32.
    """
    B, in_features = x.shape
    num_layers = len(params)
    out_features = params[-1][0].shape[1]

    # ---- pad every layer's output width to a multiple of 128 (lane-dense) ----
    # Zero-padded weight rows/cols + zero bias entries keep the math exact:
    # padded activation columns are 0, stay 0 through ReLU, and contribute 0
    # to the next layer because the matching weight rows are 0.
    padded = []
    prev_width = in_features  # first layer keeps the true input width as K
    for (w, b) in params:
        in_f, out_f = w.shape
        out_pad = _round_up(out_f, _LANE)
        w_p = jnp.zeros((prev_width, out_pad), jnp.bfloat16)
        w_p = w_p.at[:in_f, :out_f].set(w.astype(jnp.bfloat16))
        b_p = jnp.zeros((1, out_pad), jnp.float32)
        b_p = b_p.at[:, :out_f].set(jnp.reshape(b, (1, -1)).astype(jnp.float32))
        padded.append((w_p, b_p))
        prev_width = out_pad
    out_pad = prev_width

    # ---- batch tiling: multiple-of-8 row tiles; pad B if needed ----
    bt = max(8, min(batch_tile, _round_up(B, 8)))
    bt = _round_up(bt, 8)  # keep the (8, 128) sublane rule for any batch_tile
    Bp = _round_up(B, bt)
    if Bp != B:
        x = jnp.pad(x, ((0, Bp - B), (0, 0)))

    kernel = _make_mlp_kernel(num_layers)

    # x tiled along batch; all weights/biases fully resident (grid-invariant blocks).
    in_specs = [pl.BlockSpec((bt, in_features), lambda i: (i, 0))]
    flat_params = []
    for (w_p, b_p) in padded:
        in_specs.append(pl.BlockSpec(w_p.shape, lambda i: (0, 0)))
        in_specs.append(pl.BlockSpec(b_p.shape, lambda i: (0, 0)))
        flat_params.extend([w_p, b_p])

    out_spec = pl.BlockSpec((bt, out_pad), lambda i: (i, 0))

    out_padded = pl.pallas_call(
        kernel,
        out_shape=jax.ShapeDtypeStruct((Bp, out_pad), jnp.float32),
        grid_spec=pltpu.PrefetchScalarGridSpec(
            num_scalar_prefetch=0,
            grid=(Bp // bt,),
            in_specs=in_specs,
            out_specs=out_spec,
        ),
        compiler_params=pltpu.CompilerParams(
            # Batch axis is independent -> shard grid steps across v7x's 2 TCs.
            dimension_semantics=("parallel",),
        ),
    )(x, *flat_params)

    return out_padded[:B, :out_features]


def init_cardnet_params(key, input_size, layer_sizes):
    """Deterministic init mirroring CardNet.__init__ layer shapes.

    Hidden Linear layers from `layer_sizes`, plus final Linear(current_size, 52*4).
    Weights are (in_features, out_features), i.e. transposed vs. PyTorch storage.
    """
    sizes = list(layer_sizes) + [_OUT_FEATURES]
    params = []
    current = input_size
    for out_sz in sizes:
        key, wk, bk = jax.random.split(key, 3)
        bound = 1.0 / jnp.sqrt(current)  # nn.Linear default fan-in scale
        w = jax.random.uniform(wk, (current, out_sz), jnp.float32, -bound, bound)
        b = jax.random.uniform(bk, (1, out_sz), jnp.float32, -bound, bound)
        params.append((w, b))
        current = out_sz
    return params


def cardnet_reference(x, params, *, compute_dtype=None):
    """Pure-JAX reference. compute_dtype=jnp.bfloat16 emulates the kernel's matmul precision."""
    h = x
    n = len(params)
    for i, (w, b) in enumerate(params):
        if compute_dtype is not None:
            h = jnp.dot(h.astype(compute_dtype), w.astype(compute_dtype),
                        preferred_element_type=jnp.float32) + b
        else:
            h = h @ w + b
        if i < n - 1:
            h = jnp.maximum(h, 0.0)
    return h


if __name__ == "__main__":
    key = jax.random.PRNGKey(0)

    input_size = 32
    layer_sizes = [64, 32]
    batch = 512  # 2 grid steps of 256 rows -> feeds both TensorCores on v7x

    pkey, xkey = jax.random.split(key)
    params = init_cardnet_params(pkey, input_size, layer_sizes)
    x = jax.random.normal(xkey, (batch, input_size), jnp.float32)

    out = jax.block_until_ready(cardnet_forward(x, params, batch_tile=256))
    assert out.shape == (batch, _OUT_FEATURES), out.shape

    # Tight check vs a bf16-matmul / f32-accumulate reference (same arithmetic).
    ref_bf16 = cardnet_reference(x, params, compute_dtype=jnp.bfloat16)
    assert jnp.allclose(out, ref_bf16, atol=2e-3, rtol=2e-3), "mismatch vs bf16 reference"

    # Loose check vs the full-f32 reference (bf16 matmul inputs -> looser tolerance).
    ref_f32 = cardnet_reference(x, params)
    assert jnp.allclose(out, ref_f32, atol=5e-2, rtol=5e-2), "mismatch vs f32 reference"

    print("KERNEL_OK")
</pallas_src>

<mosaic_0001>
module attributes {stable_mosaic.version = 11 : i64} {
  func.func @kernel(%arg0: i32, %arg1: memref<256x32xf32, #tpu.memory_space<vmem>>, %arg2: memref<32x128xbf16, #tpu.memory_space<vmem>>, %arg3: memref<1x128xf32, #tpu.memory_space<vmem>>, %arg4: memref<128x128xbf16, #tpu.memory_space<vmem>>, %arg5: memref<1x128xf32, #tpu.memory_space<vmem>>, %arg6: memref<128x256xbf16, #tpu.memory_space<vmem>>, %arg7: memref<1x256xf32, #tpu.memory_space<vmem>>, %arg8: memref<256x256xf32, #tpu.memory_space<vmem>>) attributes {dimension_semantics = [#tpu.dimension_semantics<parallel>], iteration_bounds = array<i64: 2>, scalar_prefetch = 0 : i64, scratch_operands = 0 : i64, tpu.core_type = #tpu.core_type<tc>, window_params = [{transform_indices = @transform_0, window_bounds = array<i64: 256, 32>}, {pipeline_mode = #tpu.pipeline_mode<synchronous>, transform_indices = @transform_1, window_bounds = array<i64: 32, 128>}, {pipeline_mode = #tpu.pipeline_mode<synchronous>, transform_indices = @transform_2, window_bounds = array<i64: 1, 128>}, {pipeline_mode = #tpu.pipeline_mode<synchronous>, transform_indices = @transform_3, window_bounds = array<i64: 128, 128>}, {pipeline_mode = #tpu.pipeline_mode<synchronous>, transform_indices = @transform_4, window_bounds = array<i64: 1, 128>}, {pipeline_mode = #tpu.pipeline_mode<synchronous>, transform_indices = @transform_5, window_bounds = array<i64: 128, 256>}, {pipeline_mode = #tpu.pipeline_mode<synchronous>, transform_indices = @transform_6, window_bounds = array<i64: 1, 256>}, {transform_indices = @transform_7, window_bounds = array<i64: 256, 256>}]} {
    %c0 = arith.constant 0 : index
    %c0_0 = arith.constant 0 : index
    %0 = vector.load %arg1[%c0, %c0_0] : memref<256x32xf32, #tpu.memory_space<vmem>>, vector<256x32xf32>
    %1 = arith.truncf %0 : vector<256x32xf32> to vector<256x32xbf16>
    %c0_1 = arith.constant 0 : index
    %c0_2 = arith.constant 0 : index
    %2 = vector.load %arg2[%c0_1, %c0_2] : memref<32x128xbf16, #tpu.memory_space<vmem>>, vector<32x128xbf16>
    %c0_3 = arith.constant 0 : index
    %c0_4 = arith.constant 0 : index
    %3 = vector.load %arg3[%c0_3, %c0_4] : memref<1x128xf32, #tpu.memory_space<vmem>>, vector<1x128xf32>
    %cst = arith.constant dense<0.000000e+00> : vector<256x128xf32>
    %4 = tpu.matmul %1, %2, %cst {dimension_numbers = #tpu.dot_dimension_numbers<[1], [0], [0], [1], [0, 0, 1, 1], [], []>} : vector<256x32xbf16>, vector<32x128xbf16>, vector<256x128xf32> -> vector<256x128xf32>
    %5 = vector.broadcast %3 : vector<1x128xf32> to vector<256x128xf32>
    %6 = arith.addf %4, %5 : vector<256x128xf32>
    %cst_5 = arith.constant 0.000000e+00 : f32
    %7 = vector.broadcast %cst_5 : f32 to vector<256x128xf32>
    %8 = arith.maximumf %6, %7 : vector<256x128xf32>
    %9 = arith.truncf %8 : vector<256x128xf32> to vector<256x128xbf16>
    %c0_6 = arith.constant 0 : index
    %c0_7 = arith.constant 0 : index
    %10 = vector.load %arg4[%c0_6, %c0_7] : memref<128x128xbf16, #tpu.memory_space<vmem>>, vector<128x128xbf16>
    %c0_8 = arith.constant 0 : index
    %c0_9 = arith.constant 0 : index
    %11 = vector.load %arg5[%c0_8, %c0_9] : memref<1x128xf32, #tpu.memory_space<vmem>>, vector<1x128xf32>
    %cst_10 = arith.constant dense<0.000000e+00> : vector<256x128xf32>
    %12 = tpu.matmul %9, %10, %cst_10 {dimension_numbers = #tpu.dot_dimension_numbers<[1], [0], [0], [1], [0, 0, 1, 1], [], []>} : vector<256x128xbf16>, vector<128x128xbf16>, vector<256x128xf32> -> vector<256x128xf32>
    %13 = vector.broadcast %11 : vector<1x128xf32> to vector<256x128xf32>
    %14 = arith.addf %12, %13 : vector<256x128xf32>
    %cst_11 = arith.constant 0.000000e+00 : f32
    %15 = vector.broadcast %cst_11 : f32 to vector<256x128xf32>
    %16 = arith.maximumf %14, %15 : vector<256x128xf32>
    %17 = arith.truncf %16 : vector<256x128xf32> to vector<256x128xbf16>
    %c0_12 = arith.constant 0 : index
    %c0_13 = arith.constant 0 : index
    %18 = vector.load %arg6[%c0_12, %c0_13] : memref<128x256xbf16, #tpu.memory_space<vmem>>, vector<128x256xbf16>
    %c0_14 = arith.constant 0 : index
    %c0_15 = arith.constant 0 : index
    %19 = vector.load %arg7[%c0_14, %c0_15] : memref<1x256xf32, #tpu.memory_space<vmem>>, vector<1x256xf32>
    %cst_16 = arith.constant dense<0.000000e+00> : vector<256x256xf32>
    %20 = tpu.matmul %17, %18, %cst_16 {dimension_numbers = #tpu.dot_dimension_numbers<[1], [0], [0], [1], [0, 0, 1, 1], [], []>} : vector<256x128xbf16>, vector<128x256xbf16>, vector<256x256xf32> -> vector<256x256xf32>
    %21 = vector.broadcast %19 : vector<1x256xf32> to vector<256x256xf32>
    %22 = arith.addf %20, %21 : vector<256x256xf32>
    %c0_17 = arith.constant 0 : index
    %c0_18 = arith.constant 0 : index
    %23 = vector.load %arg8[%c0_17, %c0_18] : memref<256x256xf32, #tpu.memory_space<vmem>>, vector<256x256xf32>
    tpu.vector_store %arg8[%c0_17, %c0_18], %22 {strides = array<i32>} : memref<256x256xf32, #tpu.memory_space<vmem>>, vector<256x256xf32>,
    return
  }
  func.func @transform_0(%arg0: i32) -> (i32, i32) {
    %c0_i32 = arith.constant 0 : i32
    %c0_i32_0 = arith.constant 0 : i32
    return %arg0, %c0_i32 : i32, i32
  }
  func.func @transform_1(%arg0: i32) -> (i32, i32) {
    %c0_i32 = arith.constant 0 : i32
    %c0_i32_0 = arith.constant 0 : i32
    %c0_i32_1 = arith.constant 0 : i32
    return %c0_i32, %c0_i32_0 : i32, i32
  }
  func.func @transform_2(%arg0: i32) -> (i32, i32) {
    %c0_i32 = arith.constant 0 : i32
    %c0_i32_0 = arith.constant 0 : i32
    %c0_i32_1 = arith.constant 0 : i32
    return %c0_i32, %c0_i32_0 : i32, i32
  }
  func.func @transform_3(%arg0: i32) -> (i32, i32) {
    %c0_i32 = arith.constant 0 : i32
    %c0_i32_0 = arith.constant 0 : i32
    %c0_i32_1 = arith.constant 0 : i32
    return %c0_i32, %c0_i32_0 : i32, i32
  }
  func.func @transform_4(%arg0: i32) -> (i32, i32) {
    %c0_i32 = arith.constant 0 : i32
    %c0_i32_0 = arith.constant 0 : i32
    %c0_i32_1 = arith.constant 0 : i32
    return %c0_i32, %c0_i32_0 : i32, i32
  }
  func.func @transform_5(%arg0: i32) -> (i32, i32) {
    %c0_i32 = arith.constant 0 : i32
    %c0_i32_0 = arith.constant 0 : i32
    %c0_i32_1 = arith.constant 0 : i32
    return %c0_i32, %c0_i32_0 : i32, i32
  }
  func.func @transform_6(%arg0: i32) -> (i32, i32) {
    %c0_i32 = arith.constant 0 : i32
    %c0_i32_0 = arith.constant 0 : i32
    %c0_i32_1 = arith.constant 0 : i32
    return %c0_i32, %c0_i32_0 : i32, i32
  }
  func.func @transform_7(%arg0: i32) -> (i32, i32) {
    %c0_i32 = arith.constant 0 : i32
    %c0_i32_0 = arith.constant 0 : i32
    return %arg0, %c0_i32 : i32, i32
  }
}

</mosaic_0001>

<llo_original>
// kernel: tpu_custom_call.1
$region0: #{tpu_custom_call.1}
  #allocation0 [shape = 'u32[]', space=smem, size = 0x4, offset = 0x4, fixed_abs, tag = 'smem constant byte address 0x4 - core index']
  #allocation1 [shape = 'u32[72,128]{1,0:T(1,128)}', space=vmem, size = 0x9000, scoped, tag = 'internal scratch']
  %s0 = inlined_call_operand.vmem [shape: f32[512,32], index: 0, kind: input, shape index: {}]
  %s1 = inlined_call_operand.vmem [shape: bf16[32,128], index: 1, kind: input, shape index: {}]
  %s2 = inlined_call_operand.vmem [shape: f32[1,128], index: 2, kind: input, shape index: {}]
  %s3 = inlined_call_operand.vmem [shape: bf16[128,128], index: 3, kind: input, shape index: {}]
  %s4 = inlined_call_operand.vmem [shape: f32[1,128], index: 4, kind: input, shape index: {}]
  %s5 = inlined_call_operand.vmem [shape: bf16[128,256], index: 5, kind: input, shape index: {}]
  %s6 = inlined_call_operand.vmem [shape: f32[1,256], index: 6, kind: input, shape index: {}]
  %s7 = inlined_call_operand.hbm [shape: f32[512,256], index: 7, kind: output, shape index: {}]
  %s8 = sld [smem:[#allocation0]]
  $region61: #{tpu_custom_call.1} parent=0
    _
  %s10 = ssub.s32 1, %s8
  %s11 = scalar_select 0, %s10, %s8
  $region1: #{tpu_custom_call.1} parent=0
    #allocation2 [shape = 'u8[524288]{0}', space=vmem, size = 0x80000, scoped, tag = 'output window, operand 0']
    #allocation3 [shape = 's32[2]{0}', space=sflag, size = 0x8, scoped, tag = 'scoped memory for tpu_custom_call.1']
    %12 = vsyncpa [#allocation3], 0
    %s13 = scalar_lea.sflag [#allocation3], 1
    %14 = vsyncpa %s13, 0
    loop: start=0, step=1, limit=4
    $region2: #{tpu_custom_call.1} parent=1 // loop_pre_header
      _
    $region3: #{tpu_custom_call.1} parent=1 // loop_header
      %s16 = sphi 0, %s20
      %p17 = scmp.ge.s32.totalorder %s16, 4
      %s26 = sphi 0, %s28
      %s29 = sphi 0, %s26
      %s30 = sphi 0, %s29
      %s46 = sphi 0, %s30
      %s50 = sphi 0, %s50
      %s52 = sphi 0, %s50
      %s53 = sphi 0, %s52
      %s67 = sphi 0, %s53
      %s71 = sphi 0, %s71
      %s73 = sphi 0, %s71
      %s74 = sphi 0, %s73
      %s88 = sphi 0, %s74
      %s92 = sphi 0, %s92
      %s94 = sphi 0, %s92
      %s95 = sphi 0, %s94
      %s109 = sphi 0, %s95
      %s113 = sphi 0, %s113
      %s115 = sphi 0, %s113
      %s116 = sphi 0, %s115
      %s130 = sphi 0, %s116
      %s134 = sphi 0, %s134
      %s136 = sphi 0, %s134
      %s137 = sphi 0, %s136
      %s151 = sphi 0, %s137
      %s155 = sphi 0, %s155
      %s157 = sphi 0, %s155
      %s158 = sphi 0, %s157
      %s172 = sphi 0, %s158
      %s178 = sphi 0, %s180
      %s181 = sphi 0, %s178
      %s182 = sphi 0, %s181
      %s198 = sphi 0, %s182
    $region4: #{tpu_custom_call.1} parent=1 // loop_header_branch
      %19 = sbr.rel (%p17) target = $region8
    $region5: #{tpu_custom_call.1} parent=1 // loop_body
      %s21 = ssub.s32 %s16, 1
      %s22 = ssub.s32 %s16, 2
      %s23 = sadd.s32 %s16, 1
      %s24 = ssub.s32 %s16, %s23
      %p25 = scmp.eq.s32.totalorder %s24, 0
      %s27 = sadd.s32 %s26, 1
      %s28 = scalar_select %p25, %s26, %s27
      %p31 = pneg %p25
      %p32 = scmp.eq.s32.totalorder %s16, 1
      %p33 = por %p31, %p32
      %p34 = scmp.ne.s32.totalorder %s26, %s29
      %p35 = scmp.eq.s32.totalorder %s16, 0
      %p36 = por %p34, %p35
      %p37 = scmp.ne.s32.totalorder %s26, %s29
      %p38 = scmp.eq.s32.totalorder %s21, 1
      %p39 = por %p37, %p38
      %p40 = scmp.ne.s32.totalorder %s29, %s30
      %p41 = scmp.eq.s32.totalorder %s21, 0
      %p42 = por %p40, %p41
      %p43 = scmp.ne.s32.totalorder %s29, %s30
      %p44 = scmp.eq.s32.totalorder %s22, 1
      %p45 = por %p43, %p44
      %p47 = scmp.ne.s32.totalorder %s30, %s46
      %p48 = scmp.eq.s32.totalorder %s22, 0
      %p49 = por %p47, %p48
      %s51 = sadd.s32 %s50, 1
      %p54 = scmp.eq.s32.totalorder %s16, 1
      %p55 = scmp.ne.s32.totalorder %s50, %s52
      %p56 = scmp.eq.s32.totalorder %s16, 0
      %p57 = por %p55, %p56
      %p58 = scmp.ne.s32.totalorder %s50, %s52
      %p59 = scmp.eq.s32.totalorder %s21, 1
      %p60 = por %p58, %p59
      %p61 = scmp.ne.s32.totalorder %s52, %s53
      %p62 = scmp.eq.s32.totalorder %s21, 0
      %p63 = por %p61, %p62
      %p64 = scmp.ne.s32.totalorder %s52, %s53
      %p65 = scmp.eq.s32.totalorder %s22, 1
      %p66 = por %p64, %p65
      %p68 = scmp.ne.s32.totalorder %s53, %s67
      %p69 = scmp.eq.s32.totalorder %s22, 0
      %p70 = por %p68, %p69
      %s72 = sadd.s32 %s71, 1
      %p75 = scmp.eq.s32.totalorder %s16, 1
      %p76 = scmp.ne.s32.totalorder %s71, %s73
      %p77 = scmp.eq.s32.totalorder %s16, 0
      %p78 = por %p76, %p77
      %p79 = scmp.ne.s32.totalorder %s71, %s73
      %p80 = scmp.eq.s32.totalorder %s21, 1
      %p81 = por %p79, %p80
      %p82 = scmp.ne.s32.totalorder %s73, %s74
      %p83 = scmp.eq.s32.totalorder %s21, 0
      %p84 = por %p82, %p83
      %p85 = scmp.ne.s32.totalorder %s73, %s74
      %p86 = scmp.eq.s32.totalorder %s22, 1
      %p87 = por %p85, %p86
      %p89 = scmp.ne.s32.totalorder %s74, %s88
      %p90 = scmp.eq.s32.totalorder %s22, 0
      %p91 = por %p89, %p90
      %s93 = sadd.s32 %s92, 1
      %p96 = scmp.eq.s32.totalorder %s16, 1
      %p97 = scmp.ne.s32.totalorder %s92, %s94
      %p98 = scmp.eq.s32.totalorder %s16, 0
      %p99 = por %p97, %p98
      %p100 = scmp.ne.s32.totalorder %s92, %s94
      %p101 = scmp.eq.s32.totalorder %s21, 1
      %p102 = por %p100, %p101
      %p103 = scmp.ne.s32.totalorder %s94, %s95
      %p104 = scmp.eq.s32.totalorder %s21, 0
      %p105 = por %p103, %p104
      %p106 = scmp.ne.s32.totalorder %s94, %s95
      %p107 = scmp.eq.s32.totalorder %s22, 1
      %p108 = por %p106, %p107
      %p110 = scmp.ne.s32.totalorder %s95, %s109
      %p111 = scmp.eq.s32.totalorder %s22, 0
      %p112 = por %p110, %p111
      %s114 = sadd.s32 %s113, 1
      %p117 = scmp.eq.s32.totalorder %s16, 1
      %p118 = scmp.ne.s32.totalorder %s113, %s115
      %p119 = scmp.eq.s32.totalorder %s16, 0
      %p120 = por %p118, %p119
      %p121 = scmp.ne.s32.totalorder %s113, %s115
      %p122 = scmp.eq.s32.totalorder %s21, 1
      %p123 = por %p121, %p122
      %p124 = scmp.ne.s32.totalorder %s115, %s116
      %p125 = scmp.eq.s32.totalorder %s21, 0
      %p126 = por %p124, %p125
      %p127 = scmp.ne.s32.totalorder %s115, %s116
      %p128 = scmp.eq.s32.totalorder %s22, 1
      %p129 = por %p127, %p128
      %p131 = scmp.ne.s32.totalorder %s116, %s130
      %p132 = scmp.eq.s32.totalorder %s22, 0
      %p133 = por %p131, %p132
      %s135 = sadd.s32 %s134, 1
      %p138 = scmp.eq.s32.totalorder %s16, 1
      %p139 = scmp.ne.s32.totalorder %s134, %s136
      %p140 = scmp.eq.s32.totalorder %s16, 0
      %p141 = por %p139, %p140
      %p142 = scmp.ne.s32.totalorder %s134, %s136
      %p143 = scmp.eq.s32.totalorder %s21, 1
      %p144 = por %p142, %p143
      %p145 = scmp.ne.s32.totalorder %s136, %s137
      %p146 = scmp.eq.s32.totalorder %s21, 0
      %p147 = por %p145, %p146
      %p148 = scmp.ne.s32.totalorder %s136, %s137
      %p149 = scmp.eq.s32.totalorder %s22, 1
      %p150 = por %p148, %p149
      %p152 = scmp.ne.s32.totalorder %s137, %s151
      %p153 = scmp.eq.s32.totalorder %s22, 0
      %p154 = por %p152, %p153
      %s156 = sadd.s32 %s155, 1
      %p159 = scmp.eq.s32.totalorder %s16, 1
      %p160 = scmp.ne.s32.totalorder %s155, %s157
      %p161 = scmp.eq.s32.totalorder %s16, 0
      %p162 = por %p160, %p161
      %p163 = scmp.ne.s32.totalorder %s155, %s157
      %p164 = scmp.eq.s32.totalorder %s21, 1
      %p165 = por %p163, %p164
      %p166 = scmp.ne.s32.totalorder %s157, %s158
      %p167 = scmp.eq.s32.totalorder %s21, 0
      %p168 = por %p166, %p167
      %p169 = scmp.ne.s32.totalorder %s157, %s158
      %p170 = scmp.eq.s32.totalorder %s22, 1
      %p171 = por %p169, %p170
      %p173 = scmp.ne.s32.totalorder %s158, %s172
      %p174 = scmp.eq.s32.totalorder %s22, 0
      %p175 = por %p173, %p174
      %s176 = ssub.s32 %s16, %s23
      %p177 = scmp.eq.s32.totalorder %s176, 0
      %s179 = sadd.s32 %s178, 1
      %s180 = scalar_select %p177, %s178, %s179
      %p183 = pneg %p177
      %p184 = scmp.eq.s32.totalorder %s16, 1
      %p185 = por %p183, %p184
      %p186 = scmp.ne.s32.totalorder %s178, %s181
      %p187 = scmp.eq.s32.totalorder %s16, 0
      %p188 = por %p186, %p187
      %p189 = scmp.ne.s32.totalorder %s178, %s181
      %p190 = scmp.eq.s32.totalorder %s21, 1
      %p191 = por %p189, %p190
      %p192 = scmp.ne.s32.totalorder %s181, %s182
      %p193 = scmp.eq.s32.totalorder %s21, 0
      %p194 = por %p192, %p193
      %p195 = scmp.ne.s32.totalorder %s181, %s182
      %p196 = scmp.eq.s32.totalorder %s22, 1
      %p197 = por %p195, %p196
      %p199 = scmp.ne.s32.totalorder %s182, %s198
      %p200 = scmp.eq.s32.totalorder %s22, 0
      %p201 = por %p199, %p200
      %p202 = scmp.le.s32.totalorder 1, %s16
      %p203 = scmp.lt.s32.totalorder %s16, 3
      %p204 = pnand %p202, %p203
      %p205 = pneg %p204
      // Predicated region
      $region9: #{tpu_custom_call.1} parent=5 // pred_check
        _
      $region10: #{tpu_custom_call.1} parent=5 // pred_check_branch
        %207 = sbr.rel (%p204) target = $region12
      $region11: #{tpu_custom_call.1} parent=5 // pred_region
        %s208 = ssub.s32 %s16, 1
        // Predicated region
        $region13: #{tpu_custom_call.1} parent=11 // pred_check
          %p209 = pneg %p63
        $region14: #{tpu_custom_call.1} parent=11 // pred_check_branch
          %211 = sbr.rel (%p209) target = $region16
        $region15: #{tpu_custom_call.1} parent=11 // pred_region
          _
        $region16: #{tpu_custom_call.1} parent=11 // pred_fallthru
          _
        // Predicated region
        $region17: #{tpu_custom_call.1} parent=11 // pred_check
          %p212 = pneg %p84
        $region18: #{tpu_custom_call.1} parent=11 // pred_check_branch
          %214 = sbr.rel (%p212) target = $region20
        $region19: #{tpu_custom_call.1} parent=11 // pred_region
          _
        $region20: #{tpu_custom_call.1} parent=11 // pred_fallthru
          _
        // Predicated region
        $region21: #{tpu_custom_call.1} parent=11 // pred_check
          %p215 = pneg %p105
        $region22: #{tpu_custom_call.1} parent=11 // pred_check_branch
          %217 = sbr.rel (%p215) target = $region24
        $region23: #{tpu_custom_call.1} parent=11 // pred_region
          _
        $region24: #{tpu_custom_call.1} parent=11 // pred_fallthru
          _
        // Predicated region
        $region25: #{tpu_custom_call.1} parent=11 // pred_check
          %p218 = pneg %p126
        $region26: #{tpu_custom_call.1} parent=11 // pred_check_branch
          %220 = sbr.rel (%p218) target = $region28
        $region27: #{tpu_custom_call.1} parent=11 // pred_region
          _
        $region28: #{tpu_custom_call.1} parent=11 // pred_fallthru
          _
        // Predicated region
        $region29: #{tpu_custom_call.1} parent=11 // pred_check
          %p221 = pneg %p147
        $region30: #{tpu_custom_call.1} parent=11 // pred_check_branch
          %223 = sbr.rel (%p221) target = $region32
        $region31: #{tpu_custom_call.1} parent=11 // pred_region
          _
        $region32: #{tpu_custom_call.1} parent=11 // pred_fallthru
          _
        // Predicated region
        $region33: #{tpu_custom_call.1} parent=11 // pred_check
          %p224 = pneg %p168
        $region34: #{tpu_custom_call.1} parent=11 // pred_check_branch
          %226 = sbr.rel (%p224) target = $region36
        $region35: #{tpu_custom_call.1} parent=11 // pred_region
          _
        $region36: #{tpu_custom_call.1} parent=11 // pred_fallthru
          _
      $region12: #{tpu_custom_call.1} parent=5 // pred_fallthru
        _
      %p227 = scmp.lt.s32.totalorder %s16, 2
      // Predicated region
      $region37: #{tpu_custom_call.1} parent=5 // pred_check
        %p228 = pneg %p227
      $region38: #{tpu_custom_call.1} parent=5 // pred_check_branch
        %230 = sbr.rel (%p228) target = $region40
      $region39: #{tpu_custom_call.1} parent=5 // pred_region
        // Predicated region
        $region41: #{tpu_custom_call.1} parent=39 // pred_check
          %p231 = pneg %p36
        $region42: #{tpu_custom_call.1} parent=39 // pred_check_branch
          %233 = sbr.rel (%p231) target = $region44
        $region43: #{tpu_custom_call.1} parent=39 // pred_region
          %s234 = smul.u32 32, %s16
          %p235 = scmp.lt.s32.totalorder %s234, 63
          %s236 = scalar_select %p235, %s234, 63
          %s237 = smul.addr %s236, 8
          %s238 = scalar_lea.vmem %s0, %s237
          %s239 = smul.u32 32, %s16
        $region44: #{tpu_custom_call.1} parent=39 // pred_fallthru
          _
      $region40: #{tpu_custom_call.1} parent=5 // pred_fallthru
        _
      %p240 = scmp.le.s32.totalorder 1, %s16
      %p241 = scmp.lt.s32.totalorder %s16, 3
      %p242 = pnand %p240, %p241
      %p243 = pneg %p242
      // Predicated region
      $region45: #{tpu_custom_call.1} parent=5 // pred_check
        _
      $region46: #{tpu_custom_call.1} parent=5 // pred_check_branch
        %245 = sbr.rel (%p242) target = $region48
      $region47: #{tpu_custom_call.1} parent=5 // pred_region
        %s246 = ssub.s32 %s16, 1
        %s247 = smul.u32 32, %s21
        %p248 = scmp.lt.s32.totalorder %s247, 63
        %s249 = scalar_select %p248, %s247, 63
        %s250 = smul.addr %s249, 8
        %s251 = scalar_lea.vmem %s0, %s250
        %p252 = pneg %p42
        %p253 = pneg %p39
        %p254 = pneg %p63
        %p255 = pneg %p60
        %p256 = pneg %p84
        %p257 = pneg %p81
        %p258 = pneg %p105
        %p259 = pneg %p102
        %p260 = pneg %p126
        %p261 = pneg %p123
        %p262 = pneg %p147
        %p263 = pneg %p144
        %p264 = pneg %p168
        %p265 = pneg %p165
        %p266 = pneg %p194
        %p267 = pneg %p191
        %s268 = sand.u32 %s181, 1
        %s269 = scalar_lea.sflag [#allocation3], %s268
        %s270 = sand.u32 %s181, 1
        %s271 = smul.addr %s270, 512
        %s272 = scalar_lea.vmem [#allocation2], %s271
        %s273 = smul.u32 32, %s21
        %p274 = scmp.lt.s32.totalorder %s273, 63
        %s275 = scalar_select %p274, %s273, 63
        %s276 = smul.addr %s275, 8
        %s277 = scalar_lea.vmem %s0, %s276
        %s278 = smul.u32 32, %s21
        %s279 = smul.u32 32, %s21
        %v281 = vld [vmem:[%s277] sm:$0xff]
        %v282 = vld [vmem:[%s277 + $0x8] sm:$0xff]
        %v283 = vld [vmem:[%s277 + $0x10] sm:$0xff]
        %v284 = vld [vmem:[%s277 + $0x18] sm:$0xff]
        %v285 = vld [vmem:[%s277 + $0x20] sm:$0xff]
        %v286 = vld [vmem:[%s277 + $0x28] sm:$0xff]
        %v287 = vld [vmem:[%s277 + $0x30] sm:$0xff]
        %v288 = vld [vmem:[%s277 + $0x38] sm:$0xff]
        %v289 = vld [vmem:[%s277 + $0x40] sm:$0xff]
        %v290 = vld [vmem:[%s277 + $0x48] sm:$0xff]
        %v291 = vld [vmem:[%s277 + $0x50] sm:$0xff]
        %v292 = vld [vmem:[%s277 + $0x58] sm:$0xff]
        %v293 = vld [vmem:[%s277 + $0x60] sm:$0xff]
        %v294 = vld [vmem:[%s277 + $0x68] sm:$0xff]
        %v295 = vld [vmem:[%s277 + $0x70] sm:$0xff]
        %v296 = vld [vmem:[%s277 + $0x78] sm:$0xff]
        %v297 = vld [vmem:[%s277 + $0x80] sm:$0xff]
        %v298 = vld [vmem:[%s277 + $0x88] sm:$0xff]
        %v299 = vld [vmem:[%s277 + $0x90] sm:$0xff]
        %v300 = vld [vmem:[%s277 + $0x98] sm:$0xff]
        %v301 = vld [vmem:[%s277 + $0xa0] sm:$0xff]
        %v302 = vld [vmem:[%s277 + $0xa8] sm:$0xff]
        %v303 = vld [vmem:[%s277 + $0xb0] sm:$0xff]
        %v304 = vld [vmem:[%s277 + $0xb8] sm:$0xff]
        %v305 = vld [vmem:[%s277 + $0xc0] sm:$0xff]
        %v306 = vld [vmem:[%s277 + $0xc8] sm:$0xff]
        %v307 = vld [vmem:[%s277 + $0xd0] sm:$0xff]
        %v308 = vld [vmem:[%s277 + $0xd8] sm:$0xff]
        %v309 = vld [vmem:[%s277 + $0xe0] sm:$0xff]
        %v310 = vld [vmem:[%s277 + $0xe8] sm:$0xff]
        %v311 = vld [vmem:[%s277 + $0xf0] sm:$0xff]
        %v312 = vld [vmem:[%s277 + $0xf8] sm:$0xff]
        %v313 = vpack.c.bf16 %v282, %v281
        %v314 = vpack.c.bf16 %v284, %v283
        %v315 = vpack.c.bf16 %v286, %v285
        %v316 = vpack.c.bf16 %v288, %v287
        %v317 = vpack.c.bf16 %v290, %v289
        %v318 = vpack.c.bf16 %v292, %v291
        %v319 = vpack.c.bf16 %v294, %v293
        %v320 = vpack.c.bf16 %v296, %v295
        %v321 = vpack.c.bf16 %v298, %v297
        %v322 = vpack.c.bf16 %v300, %v299
        %v323 = vpack.c.bf16 %v302, %v301
        %v324 = vpack.c.bf16 %v304, %v303
        %v325 = vpack.c.bf16 %v306, %v305
        %v326 = vpack.c.bf16 %v308, %v307
        %v327 = vpack.c.bf16 %v310, %v309
        %v328 = vpack.c.bf16 %v312, %v311
        %v329 = vld [vmem:[%s1] sm:$0xf]
        %v330 = vld [vmem:[%s1 + $0x4] sm:$0xf]
        %v331 = vld [vmem:[%s1 + $0x8] sm:$0xf]
        %v332 = vld [vmem:[%s1 + $0xc] sm:$0xf]
        %v333 = vld [vmem:[%s2] sm:$0x1]
        %v335 = vperm.slane %v333, 0
        %v341 = vunpack.c.l.b16 %v329
        %v342 = vunpack.c.l.b16 %v330
        %v343 = vunpack.c.l.b16 %v331
        %v344 = vunpack.c.l.b16 %v332
        %v345 = vpack.c.b16 %v342, %v341
        %v346 = vpack.c.b16 %v344, %v343
        %vm349 = vcmask 261120
        %v351 = vsel %vm349, %v313, 0
        %v354 = vsel %vm349, %v314, 0
        %v357 = vsel %vm349, %v315, 0
        %v360 = vsel %vm349, %v316, 0
        %v363 = vsel %vm349, %v317, 0
        %v366 = vsel %vm349, %v318, 0
        %v369 = vsel %vm349, %v319, 0
        %v372 = vsel %vm349, %v320, 0
        %v375 = vsel %vm349, %v321, 0
        %v378 = vsel %vm349, %v322, 0
        %v381 = vsel %vm349, %v323, 0
        %v384 = vsel %vm349, %v324, 0
        %v387 = vsel %vm349, %v325, 0
        %v390 = vsel %vm349, %v326, 0
        %v393 = vsel %vm349, %v327, 0
        %v396 = vsel %vm349, %v328, 0
        %398 = vmatpush.bf16.msra.mxu0 0
        %399 = vmatpush.bf16.msra.mxu0 0
        %400 = vmatpush.bf16.msra.mxu0 0
        %401 = vmatpush.bf16.msra.mxu0 0
        %402 = vmatpush.bf16.msra.mxu0 0
        %403 = vmatpush.bf16.msra.mxu0 0
        %404 = vmatpush.bf16.msra.mxu0 %v346
        %405 = vmatpush.bf16.msra.mxu0 %v345
        %406 = vmatmul.bf16.gmra.mxu0 %v351
        %v407 = vpop.f32.mrf.mxu0
        %v408 = vadd.f32 %v335, %v407
        %v409 = vpop.f32.mrf.mxu0
        %v410 = vadd.f32 %v335, %v409
        %411 = vmatmul.bf16.gmra.mxu0 %v354
        %v412 = vpop.f32.mrf.mxu0
        %v413 = vadd.f32 %v335, %v412
        %v414 = vpop.f32.mrf.mxu0
        %v415 = vadd.f32 %v335, %v414
        %416 = vmatmul.bf16.gmra.mxu0 %v357
        %v417 = vpop.f32.mrf.mxu0
        %v418 = vadd.f32 %v335, %v417
        %v419 = vpop.f32.mrf.mxu0
        %v420 = vadd.f32 %v335, %v419
        %421 = vmatmul.bf16.gmra.mxu0 %v360
        %v422 = vpop.f32.mrf.mxu0
        %v423 = vadd.f32 %v335, %v422
        %v424 = vpop.f32.mrf.mxu0
        %v425 = vadd.f32 %v335, %v424
        %426 = vmatmul.bf16.gmra.mxu0 %v363
        %v427 = vpop.f32.mrf.mxu0
        %v428 = vadd.f32 %v335, %v427
        %v429 = vpop.f32.mrf.mxu0
        %v430 = vadd.f32 %v335, %v429
        %431 = vmatmul.bf16.gmra.mxu0 %v366
        %v432 = vpop.f32.mrf.mxu0
        %v433 = vadd.f32 %v335, %v432
        %v434 = vpop.f32.mrf.mxu0
        %v435 = vadd.f32 %v335, %v434
        %436 = vmatmul.bf16.gmra.mxu0 %v369
        %v437 = vpop.f32.mrf.mxu0
        %v438 = vadd.f32 %v335, %v437
        %v439 = vpop.f32.mrf.mxu0
        %v440 = vadd.f32 %v335, %v439
        %441 = vmatmul.bf16.gmra.mxu0 %v372
        %v442 = vpop.f32.mrf.mxu0
        %v443 = vadd.f32 %v335, %v442
        %v444 = vpop.f32.mrf.mxu0
        %v445 = vadd.f32 %v335, %v444
        %446 = vmatmul.bf16.gmra.mxu0 %v375
        %v447 = vpop.f32.mrf.mxu0
        %v448 = vadd.f32 %v335, %v447
        %v449 = vpop.f32.mrf.mxu0
        %v450 = vadd.f32 %v335, %v449
        %451 = vmatmul.bf16.gmra.mxu0 %v378
        %v452 = vpop.f32.mrf.mxu0
        %v453 = vadd.f32 %v335, %v452
        %v454 = vpop.f32.mrf.mxu0
        %v455 = vadd.f32 %v335, %v454
        %456 = vmatmul.bf16.gmra.mxu0 %v381
        %v457 = vpop.f32.mrf.mxu0
        %v458 = vadd.f32 %v335, %v457
        %v459 = vpop.f32.mrf.mxu0
        %v460 = vadd.f32 %v335, %v459
        %461 = vmatmul.bf16.gmra.mxu0 %v384
        %v462 = vpop.f32.mrf.mxu0
        %v463 = vadd.f32 %v335, %v462
        %v464 = vpop.f32.mrf.mxu0
        %v465 = vadd.f32 %v335, %v464
        %466 = vmatmul.bf16.gmra.mxu0 %v387
        %v467 = vpop.f32.mrf.mxu0
        %v468 = vadd.f32 %v335, %v467
        %v469 = vpop.f32.mrf.mxu0
        %v470 = vadd.f32 %v335, %v469
        %471 = vmatmul.bf16.gmra.mxu0 %v390
        %v472 = vpop.f32.mrf.mxu0
        %v473 = vadd.f32 %v335, %v472
        %v474 = vpop.f32.mrf.mxu0
        %v475 = vadd.f32 %v335, %v474
        %476 = vmatmul.bf16.gmra.mxu0 %v393
        %v477 = vpop.f32.mrf.mxu0
        %v478 = vadd.f32 %v335, %v477
        %v479 = vpop.f32.mrf.mxu0
        %v480 = vadd.f32 %v335, %v479
        %481 = vmatmul.bf16.gmra.mxu0 %v396
        %v482 = vpop.f32.mrf.mxu0
        %v483 = vadd.f32 %v335, %v482
        %v484 = vpop.f32.mrf.mxu0
        %v485 = vadd.f32 %v335, %v484
        %486 = vdwg.mxu0
        %v487 = vmax.f32 %v408, 0.0
        %v488 = vmax.f32 %v410, 0.0
        %v489 = vmax.f32 %v413, 0.0
        %v490 = vmax.f32 %v415, 0.0
        %v491 = vmax.f32 %v418, 0.0
        %v492 = vmax.f32 %v420, 0.0
        %v493 = vmax.f32 %v423, 0.0
        %v494 = vmax.f32 %v425, 0.0
        %v495 = vmax.f32 %v428, 0.0
        %v496 = vmax.f32 %v430, 0.0
        %v497 = vmax.f32 %v433, 0.0
        %v498 = vmax.f32 %v435, 0.0
        %v499 = vmax.f32 %v438, 0.0
        %v500 = vmax.f32 %v440, 0.0
        %v501 = vmax.f32 %v443, 0.0
        %v502 = vmax.f32 %v445, 0.0
        %v503 = vmax.f32 %v448, 0.0
        %v504 = vmax.f32 %v450, 0.0
        %v505 = vmax.f32 %v453, 0.0
        %v506 = vmax.f32 %v455, 0.0
        %v507 = vmax.f32 %v458, 0.0
        %v508 = vmax.f32 %v460, 0.0
        %v509 = vmax.f32 %v463, 0.0
        %v510 = vmax.f32 %v465, 0.0
        %v511 = vmax.f32 %v468, 0.0
        %v512 = vmax.f32 %v470, 0.0
        %v513 = vmax.f32 %v473, 0.0
        %v514 = vmax.f32 %v475, 0.0
        %v515 = vmax.f32 %v478, 0.0
        %v516 = vmax.f32 %v480, 0.0
        %v517 = vmax.f32 %v483, 0.0
        %v518 = vmax.f32 %v485, 0.0
        %v519 = vpack.c.bf16 %v488, %v487
        %v520 = vpack.c.bf16 %v490, %v489
        %v521 = vpack.c.bf16 %v492, %v491
        %v522 = vpack.c.bf16 %v494, %v493
        %v523 = vpack.c.bf16 %v496, %v495
        %v524 = vpack.c.bf16 %v498, %v497
        %v525 = vpack.c.bf16 %v500, %v499
        %v526 = vpack.c.bf16 %v502, %v501
        %v527 = vpack.c.bf16 %v504, %v503
        %v528 = vpack.c.bf16 %v506, %v505
        %v529 = vpack.c.bf16 %v508, %v507
        %v530 = vpack.c.bf16 %v510, %v509
        %v531 = vpack.c.bf16 %v512, %v511
        %v532 = vpack.c.bf16 %v514, %v513
        %v533 = vpack.c.bf16 %v516, %v515
        %v534 = vpack.c.bf16 %v518, %v517
        %v535 = vld [vmem:[%s3] sm:$0xf]
        %v536 = vld [vmem:[%s3 + $0x4] sm:$0xf]
        %v537 = vld [vmem:[%s3 + $0x8] sm:$0xf]
        %v538 = vld [vmem:[%s3 + $0xc] sm:$0xf]
        %v539 = vld [vmem:[%s3 + $0x10] sm:$0xf]
        %v540 = vld [vmem:[%s3 + $0x14] sm:$0xf]
        %v541 = vld [vmem:[%s3 + $0x18] sm:$0xf]
        %v542 = vld [vmem:[%s3 + $0x1c] sm:$0xf]
        %v543 = vld [vmem:[%s3 + $0x20] sm:$0xf]
        %v544 = vld [vmem:[%s3 + $0x24] sm:$0xf]
        %v545 = vld [vmem:[%s3 + $0x28] sm:$0xf]
        %v546 = vld [vmem:[%s3 + $0x2c] sm:$0xf]
        %v547 = vld [vmem:[%s3 + $0x30] sm:$0xf]
        %v548 = vld [vmem:[%s3 + $0x34] sm:$0xf]
        %v549 = vld [vmem:[%s3 + $0x38] sm:$0xf]
        %v550 = vld [vmem:[%s3 + $0x3c] sm:$0xf]
        %v551 = vld [vmem:[%s4] sm:$0x1]
        %v553 = vperm.slane %v551, 0
        %v571 = vunpack.c.l.b16 %v535
        %v572 = vunpack.c.l.b16 %v536
        %v573 = vunpack.c.l.b16 %v537
        %v574 = vunpack.c.l.b16 %v538
        %v575 = vunpack.c.l.b16 %v539
        %v576 = vunpack.c.l.b16 %v540
        %v577 = vunpack.c.l.b16 %v541
        %v578 = vunpack.c.l.b16 %v542
        %v579 = vunpack.c.l.b16 %v543
        %v580 = vunpack.c.l.b16 %v544
        %v581 = vunpack.c.l.b16 %v545
        %v582 = vunpack.c.l.b16 %v546
        %v583 = vunpack.c.l.b16 %v547
        %v584 = vunpack.c.l.b16 %v548
        %v585 = vunpack.c.l.b16 %v549
        %v586 = vunpack.c.l.b16 %v550
        %v587 = vpack.c.b16 %v572, %v571
        %v588 = vpack.c.b16 %v574, %v573
        %v589 = vpack.c.b16 %v576, %v575
        %v590 = vpack.c.b16 %v578, %v577
        %v591 = vpack.c.b16 %v580, %v579
        %v592 = vpack.c.b16 %v582, %v581
        %v593 = vpack.c.b16 %v584, %v583
        %v594 = vpack.c.b16 %v586, %v585
        %603 = vmatpush.bf16.msra.mxu0 %v594
        %604 = vmatpush.bf16.msra.mxu0 %v593
        %605 = vmatpush.bf16.msra.mxu0 %v592
        %606 = vmatpush.bf16.msra.mxu0 %v591
        %607 = vmatpush.bf16.msra.mxu0 %v590
        %608 = vmatpush.bf16.msra.mxu0 %v589
        %609 = vmatpush.bf16.msra.mxu0 %v588
        %610 = vmatpush.bf16.msra.mxu0 %v587
        %611 = vmatmul.bf16.gmra.mxu0 %v519
        %v612 = vpop.f32.mrf.mxu0
        %v613 = vadd.f32 %v553, %v612
        %v614 = vpop.f32.mrf.mxu0
        %v615 = vadd.f32 %v553, %v614
        %616 = vmatmul.bf16.gmra.mxu0 %v520
        %v617 = vpop.f32.mrf.mxu0
        %v618 = vadd.f32 %v553, %v617
        %v619 = vpop.f32.mrf.mxu0
        %v620 = vadd.f32 %v553, %v619
        %621 = vmatmul.bf16.gmra.mxu0 %v521
        %v622 = vpop.f32.mrf.mxu0
        %v623 = vadd.f32 %v553, %v622
        %v624 = vpop.f32.mrf.mxu0
        %v625 = vadd.f32 %v553, %v624
        %626 = vmatmul.bf16.gmra.mxu0 %v522
        %v627 = vpop.f32.mrf.mxu0
        %v628 = vadd.f32 %v553, %v627
        %v629 = vpop.f32.mrf.mxu0
        %v630 = vadd.f32 %v553, %v629
        %631 = vmatmul.bf16.gmra.mxu0 %v523
        %v632 = vpop.f32.mrf.mxu0
        %v633 = vadd.f32 %v553, %v632
        %v634 = vpop.f32.mrf.mxu0
        %v635 = vadd.f32 %v553, %v634
        %636 = vmatmul.bf16.gmra.mxu0 %v524
        %v637 = vpop.f32.mrf.mxu0
        %v638 = vadd.f32 %v553, %v637
        %v639 = vpop.f32.mrf.mxu0
        %v640 = vadd.f32 %v553, %v639
        %641 = vmatmul.bf16.gmra.mxu0 %v525
        %v642 = vpop.f32.mrf.mxu0
        %v643 = vadd.f32 %v553, %v642
        %v644 = vpop.f32.mrf.mxu0
        %v645 = vadd.f32 %v553, %v644
        %646 = vmatmul.bf16.gmra.mxu0 %v526
        %v647 = vpop.f32.mrf.mxu0
        %v648 = vadd.f32 %v553, %v647
        %v649 = vpop.f32.mrf.mxu0
        %v650 = vadd.f32 %v553, %v649
        %651 = vmatmul.bf16.gmra.mxu0 %v527
        %v652 = vpop.f32.mrf.mxu0
        %v653 = vadd.f32 %v553, %v652
        %v654 = vpop.f32.mrf.mxu0
        %v655 = vadd.f32 %v553, %v654
        %656 = vmatmul.bf16.gmra.mxu0 %v528
        %v657 = vpop.f32.mrf.mxu0
        %v658 = vadd.f32 %v553, %v657
        %v659 = vpop.f32.mrf.mxu0
        %v660 = vadd.f32 %v553, %v659
        %661 = vmatmul.bf16.gmra.mxu0 %v529
        %v662 = vpop.f32.mrf.mxu0
        %v663 = vadd.f32 %v553, %v662
        %v664 = vpop.f32.mrf.mxu0
        %v665 = vadd.f32 %v553, %v664
        %666 = vmatmul.bf16.gmra.mxu0 %v530
        %v667 = vpop.f32.mrf.mxu0
        %v668 = vadd.f32 %v553, %v667
        %v669 = vpop.f32.mrf.mxu0
        %v670 = vadd.f32 %v553, %v669
        %671 = vmatmul.bf16.gmra.mxu0 %v531
        %v672 = vpop.f32.mrf.mxu0
        %v673 = vadd.f32 %v553, %v672
        %v674 = vpop.f32.mrf.mxu0
        %v675 = vadd.f32 %v553, %v674
        %676 = vmatmul.bf16.gmra.mxu0 %v532
        %v677 = vpop.f32.mrf.mxu0
        %v678 = vadd.f32 %v553, %v677
        %v679 = vpop.f32.mrf.mxu0
        %v680 = vadd.f32 %v553, %v679
        %681 = vmatmul.bf16.gmra.mxu0 %v533
        %v682 = vpop.f32.mrf.mxu0
        %v683 = vadd.f32 %v553, %v682
        %v684 = vpop.f32.mrf.mxu0
        %v685 = vadd.f32 %v553, %v684
        %686 = vmatmul.bf16.gmra.mxu0 %v534
        %v687 = vpop.f32.mrf.mxu0
        %v688 = vadd.f32 %v553, %v687
        %v689 = vpop.f32.mrf.mxu0
        %v690 = vadd.f32 %v553, %v689
        %691 = vdwg.mxu0
        %v692 = vmax.f32 %v613, 0.0
        %v693 = vmax.f32 %v615, 0.0
        %v694 = vmax.f32 %v618, 0.0
        %v695 = vmax.f32 %v620, 0.0
        %v696 = vmax.f32 %v623, 0.0
        %v697 = vmax.f32 %v625, 0.0
        %v698 = vmax.f32 %v628, 0.0
        %v699 = vmax.f32 %v630, 0.0
        %v700 = vmax.f32 %v633, 0.0
        %v701 = vmax.f32 %v635, 0.0
        %v702 = vmax.f32 %v638, 0.0
        %v703 = vmax.f32 %v640, 0.0
        %v704 = vmax.f32 %v643, 0.0
        %v705 = vmax.f32 %v645, 0.0
        %v706 = vmax.f32 %v648, 0.0
        %v707 = vmax.f32 %v650, 0.0
        %v708 = vmax.f32 %v653, 0.0
        %v709 = vmax.f32 %v655, 0.0
        %v710 = vmax.f32 %v658, 0.0
        %v711 = vmax.f32 %v660, 0.0
        %v712 = vmax.f32 %v663, 0.0
        %v713 = vmax.f32 %v665, 0.0
        %v714 = vmax.f32 %v668, 0.0
        %v715 = vmax.f32 %v670, 0.0
        %v716 = vmax.f32 %v673, 0.0
        %v717 = vmax.f32 %v675, 0.0
        %v718 = vmax.f32 %v678, 0.0
        %v719 = vmax.f32 %v680, 0.0
        %v720 = vmax.f32 %v683, 0.0
        %v721 = vmax.f32 %v685, 0.0
        %v722 = vmax.f32 %v688, 0.0
        %v723 = vmax.f32 %v690, 0.0
        %v724 = vpack.c.bf16 %v693, %v692
        %v725 = vpack.c.bf16 %v695, %v694
        %v726 = vpack.c.bf16 %v697, %v696
        %v727 = vpack.c.bf16 %v699, %v698
        %v728 = vpack.c.bf16 %v701, %v700
        %v729 = vpack.c.bf16 %v703, %v702
        %v730 = vpack.c.bf16 %v705, %v704
        %v731 = vpack.c.bf16 %v707, %v706
        %v732 = vpack.c.bf16 %v709, %v708
        %v733 = vpack.c.bf16 %v711, %v710
        %v734 = vpack.c.bf16 %v713, %v712
        %v735 = vpack.c.bf16 %v715, %v714
        %v736 = vpack.c.bf16 %v717, %v716
        %v737 = vpack.c.bf16 %v719, %v718
        %v738 = vpack.c.bf16 %v721, %v720
        %v739 = vpack.c.bf16 %v723, %v722
        %v740 = vld [vmem:[%s5] sm:$0xff]
        %v741 = vld [vmem:[%s5 + $0x8] sm:$0xff]
        %v742 = vld [vmem:[%s5 + $0x10] sm:$0xff]
        %v743 = vld [vmem:[%s5 + $0x18] sm:$0xff]
        %v744 = vld [vmem:[%s5 + $0x20] sm:$0xff]
        %v745 = vld [vmem:[%s5 + $0x28] sm:$0xff]
        %v746 = vld [vmem:[%s5 + $0x30] sm:$0xff]
        %v747 = vld [vmem:[%s5 + $0x38] sm:$0xff]
        %v748 = vld [vmem:[%s5 + $0x40] sm:$0xff]
        %v749 = vld [vmem:[%s5 + $0x48] sm:$0xff]
        %v750 = vld [vmem:[%s5 + $0x50] sm:$0xff]
        %v751 = vld [vmem:[%s5 + $0x58] sm:$0xff]
        %v752 = vld [vmem:[%s5 + $0x60] sm:$0xff]
        %v753 = vld [vmem:[%s5 + $0x68] sm:$0xff]
        %v754 = vld [vmem:[%s5 + $0x70] sm:$0xff]
        %v755 = vld [vmem:[%s5 + $0x78] sm:$0xff]
        %v756 = vld [vmem:[%s6] sm:$0x3]
        %v758 = vperm.slane %v756, 0
        %v759 = vperm.slane %v756, 1
        %v778 = vunpack.c.l.b16 %v740
        %v779 = vunpack.c.h.b16 %v740
        %v780 = vunpack.c.l.b16 %v741
        %v781 = vunpack.c.h.b16 %v741
        %v782 = vunpack.c.l.b16 %v742
        %v783 = vunpack.c.h.b16 %v742
        %v784 = vunpack.c.l.b16 %v743
        %v785 = vunpack.c.h.b16 %v743
        %v786 = vunpack.c.l.b16 %v744
        %v787 = vunpack.c.h.b16 %v744
        %v788 = vunpack.c.l.b16 %v745
        %v789 = vunpack.c.h.b16 %v745
        %v790 = vunpack.c.l.b16 %v746
        %v791 = vunpack.c.h.b16 %v746
        %v792 = vunpack.c.l.b16 %v747
        %v793 = vunpack.c.h.b16 %v747
        %v794 = vunpack.c.l.b16 %v748
        %v795 = vunpack.c.h.b16 %v748
        %v796 = vunpack.c.l.b16 %v749
        %v797 = vunpack.c.h.b16 %v749
        %v798 = vunpack.c.l.b16 %v750
        %v799 = vunpack.c.h.b16 %v750
        %v800 = vunpack.c.l.b16 %v751
        %v801 = vunpack.c.h.b16 %v751
        %v802 = vunpack.c.l.b16 %v752
        %v803 = vunpack.c.h.b16 %v752
        %v804 = vunpack.c.l.b16 %v753
        %v805 = vunpack.c.h.b16 %v753
        %v806 = vunpack.c.l.b16 %v754
        %v807 = vunpack.c.h.b16 %v754
        %v808 = vunpack.c.l.b16 %v755
        %v809 = vunpack.c.h.b16 %v755
        %v810 = vpack.c.b16 %v780, %v778
        %v811 = vpack.c.b16 %v781, %v779
        %v812 = vpack.c.b16 %v784, %v782
        %v813 = vpack.c.b16 %v785, %v783
        %v814 = vpack.c.b16 %v788, %v786
        %v815 = vpack.c.b16 %v789, %v787
        %v816 = vpack.c.b16 %v792, %v790
        %v817 = vpack.c.b16 %v793, %v791
        %v818 = vpack.c.b16 %v796, %v794
        %v819 = vpack.c.b16 %v797, %v795
        %v820 = vpack.c.b16 %v800, %v798
        %v821 = vpack.c.b16 %v801, %v799
        %v822 = vpack.c.b16 %v804, %v802
        %v823 = vpack.c.b16 %v805, %v803
        %v824 = vpack.c.b16 %v808, %v806
        %v825 = vpack.c.b16 %v809, %v807
        %842 = vmatpush.bf16.msra.mxu0 %v824
        %843 = vmatpush.bf16.msra.mxu0 %v822
        %844 = vmatpush.bf16.msra.mxu0 %v820
        %845 = vmatpush.bf16.msra.mxu0 %v818
        %846 = vmatpush.bf16.msra.mxu0 %v816
        %847 = vmatpush.bf16.msra.mxu0 %v814
        %848 = vmatpush.bf16.msra.mxu0 %v812
        %849 = vmatpush.bf16.msra.mxu0 %v810
        %850 = vmatmul.bf16.gmra.mxu0 %v724
        %v851 = vpop.f32.mrf.mxu0
        %v852 = vadd.f32 %v758, %v851
        %v853 = vpop.f32.mrf.mxu0
        %v854 = vadd.f32 %v758, %v853
        %855 = vmatmul.bf16.gmra.mxu0 %v725
        %v856 = vpop.f32.mrf.mxu0
        %v857 = vadd.f32 %v758, %v856
        %v858 = vpop.f32.mrf.mxu0
        %v859 = vadd.f32 %v758, %v858
        %860 = vmatmul.bf16.gmra.mxu0 %v726
        %v861 = vpop.f32.mrf.mxu0
        %v862 = vadd.f32 %v758, %v861
        %v863 = vpop.f32.mrf.mxu0
        %v864 = vadd.f32 %v758, %v863
        %865 = vmatmul.bf16.gmra.mxu0 %v727
        %v866 = vpop.f32.mrf.mxu0
        %v867 = vadd.f32 %v758, %v866
        %v868 = vpop.f32.mrf.mxu0
        %v869 = vadd.f32 %v758, %v868
        %870 = vmatmul.bf16.gmra.mxu0 %v728
        %v871 = vpop.f32.mrf.mxu0
        %v872 = vadd.f32 %v758, %v871
        %v873 = vpop.f32.mrf.mxu0
        %v874 = vadd.f32 %v758, %v873
        %875 = vmatmul.bf16.gmra.mxu0 %v729
        %v876 = vpop.f32.mrf.mxu0
        %v877 = vadd.f32 %v758, %v876
        %v878 = vpop.f32.mrf.mxu0
        %v879 = vadd.f32 %v758, %v878
        %880 = vmatmul.bf16.gmra.mxu0 %v730
        %v881 = vpop.f32.mrf.mxu0
        %v882 = vadd.f32 %v758, %v881
        %v883 = vpop.f32.mrf.mxu0
        %v884 = vadd.f32 %v758, %v883
        %885 = vmatmul.bf16.gmra.mxu0 %v731
        %v886 = vpop.f32.mrf.mxu0
        %v887 = vadd.f32 %v758, %v886
        %v888 = vpop.f32.mrf.mxu0
        %v889 = vadd.f32 %v758, %v888
        %890 = vmatmul.bf16.gmra.mxu0 %v732
        %v891 = vpop.f32.mrf.mxu0
        %v892 = vadd.f32 %v758, %v891
        %v893 = vpop.f32.mrf.mxu0
        %v894 = vadd.f32 %v758, %v893
        %895 = vmatmul.bf16.gmra.mxu0 %v733
        %v896 = vpop.f32.mrf.mxu0
        %v897 = vadd.f32 %v758, %v896
        %v898 = vpop.f32.mrf.mxu0
        %v899 = vadd.f32 %v758, %v898
        %900 = vmatmul.bf16.gmra.mxu0 %v734
        %v901 = vpop.f32.mrf.mxu0
        %v902 = vadd.f32 %v758, %v901
        %v903 = vpop.f32.mrf.mxu0
        %v904 = vadd.f32 %v758, %v903
        %905 = vmatmul.bf16.gmra.mxu0 %v735
        %v906 = vpop.f32.mrf.mxu0
        %v907 = vadd.f32 %v758, %v906
        %v908 = vpop.f32.mrf.mxu0
        %v909 = vadd.f32 %v758, %v908
        %910 = vmatmul.bf16.gmra.mxu0 %v736
        %v911 = vpop.f32.mrf.mxu0
        %v912 = vadd.f32 %v758, %v911
        %v913 = vpop.f32.mrf.mxu0
        %v914 = vadd.f32 %v758, %v913
        %915 = vmatmul.bf16.gmra.mxu0 %v737
        %v916 = vpop.f32.mrf.mxu0
        %v917 = vadd.f32 %v758, %v916
        %v918 = vpop.f32.mrf.mxu0
        %v919 = vadd.f32 %v758, %v918
        %920 = vmatmul.bf16.gmra.mxu0 %v738
        %v921 = vpop.f32.mrf.mxu0
        %v922 = vadd.f32 %v758, %v921
        %v923 = vpop.f32.mrf.mxu0
        %v924 = vadd.f32 %v758, %v923
        %925 = vmatmul.bf16.gmra.mxu0 %v739
        %v926 = vpop.f32.mrf.mxu0
        %v927 = vadd.f32 %v758, %v926
        %v928 = vpop.f32.mrf.mxu0
        %v929 = vadd.f32 %v758, %v928
        %930 = vdwg.mxu0
        %931 = vmatpush.bf16.msra.mxu0 %v825
        %932 = vmatpush.bf16.msra.mxu0 %v823
        %933 = vmatpush.bf16.msra.mxu0 %v821
        %934 = vmatpush.bf16.msra.mxu0 %v819
        %935 = vmatpush.bf16.msra.mxu0 %v817
        %936 = vmatpush.bf16.msra.mxu0 %v815
        %937 = vmatpush.bf16.msra.mxu0 %v813
        %938 = vmatpush.bf16.msra.mxu0 %v811
        %939 = vmatmul.bf16.gmra.mxu0 %v724
        %v940 = vpop.f32.mrf.mxu0
        %v941 = vadd.f32 %v759, %v940
        %v942 = vpop.f32.mrf.mxu0
        %v943 = vadd.f32 %v759, %v942
        %944 = vmatmul.bf16.gmra.mxu0 %v725
        %v945 = vpop.f32.mrf.mxu0
        %v946 = vadd.f32 %v759, %v945
        %v947 = vpop.f32.mrf.mxu0
        %v948 = vadd.f32 %v759, %v947
        %949 = vmatmul.bf16.gmra.mxu0 %v726
        %v950 = vpop.f32.mrf.mxu0
        %v951 = vadd.f32 %v759, %v950
        %v952 = vpop.f32.mrf.mxu0
        %v953 = vadd.f32 %v759, %v952
        %954 = vmatmul.bf16.gmra.mxu0 %v727
        %v955 = vpop.f32.mrf.mxu0
        %v956 = vadd.f32 %v759, %v955
        %v957 = vpop.f32.mrf.mxu0
        %v958 = vadd.f32 %v759, %v957
        %959 = vmatmul.bf16.gmra.mxu0 %v728
        %v960 = vpop.f32.mrf.mxu0
        %v961 = vadd.f32 %v759, %v960
        %v962 = vpop.f32.mrf.mxu0
        %v963 = vadd.f32 %v759, %v962
        %964 = vmatmul.bf16.gmra.mxu0 %v729
        %v965 = vpop.f32.mrf.mxu0
        %v966 = vadd.f32 %v759, %v965
        %v967 = vpop.f32.mrf.mxu0
        %v968 = vadd.f32 %v759, %v967
        %969 = vmatmul.bf16.gmra.mxu0 %v730
        %v970 = vpop.f32.mrf.mxu0
        %v971 = vadd.f32 %v759, %v970
        %v972 = vpop.f32.mrf.mxu0
        %v973 = vadd.f32 %v759, %v972
        %974 = vmatmul.bf16.gmra.mxu0 %v731
        %v975 = vpop.f32.mrf.mxu0
        %v976 = vadd.f32 %v759, %v975
        %v977 = vpop.f32.mrf.mxu0
        %v978 = vadd.f32 %v759, %v977
        %979 = vmatmul.bf16.gmra.mxu0 %v732
        %v980 = vpop.f32.mrf.mxu0
        %v981 = vadd.f32 %v759, %v980
        %v982 = vpop.f32.mrf.mxu0
        %v983 = vadd.f32 %v759, %v982
        %984 = vmatmul.bf16.gmra.mxu0 %v733
        %v985 = vpop.f32.mrf.mxu0
        %v986 = vadd.f32 %v759, %v985
        %v987 = vpop.f32.mrf.mxu0
        %v988 = vadd.f32 %v759, %v987
        %989 = vmatmul.bf16.gmra.mxu0 %v734
        %v990 = vpop.f32.mrf.mxu0
        %v991 = vadd.f32 %v759, %v990
        %v992 = vpop.f32.mrf.mxu0
        %v993 = vadd.f32 %v759, %v992
        %994 = vmatmul.bf16.gmra.mxu0 %v735
        %v995 = vpop.f32.mrf.mxu0
        %v996 = vadd.f32 %v759, %v995
        %v997 = vpop.f32.mrf.mxu0
        %v998 = vadd.f32 %v759, %v997
        %999 = vmatmul.bf16.gmra.mxu0 %v736
        %v1000 = vpop.f32.mrf.mxu0
        %v1001 = vadd.f32 %v759, %v1000
        %v1002 = vpop.f32.mrf.mxu0
        %v1003 = vadd.f32 %v759, %v1002
        %1004 = vmatmul.bf16.gmra.mxu0 %v737
        %v1005 = vpop.f32.mrf.mxu0
        %v1006 = vadd.f32 %v759, %v1005
        %v1007 = vpop.f32.mrf.mxu0
        %v1008 = vadd.f32 %v759, %v1007
        %1009 = vmatmul.bf16.gmra.mxu0 %v738
        %v1010 = vpop.f32.mrf.mxu0
        %v1011 = vadd.f32 %v759, %v1010
        %v1012 = vpop.f32.mrf.mxu0
        %v1013 = vadd.f32 %v759, %v1012
        %1014 = vmatmul.bf16.gmra.mxu0 %v739
        %v1015 = vpop.f32.mrf.mxu0
        %v1016 = vadd.f32 %v759, %v1015
        %v1017 = vpop.f32.mrf.mxu0
        %v1018 = vadd.f32 %v759, %v1017
        %1019 = vdwg.mxu0
        %1020 = vst [vmem:[%s272] sm:$0xff] %v852
        %1021 = vst [vmem:[%s272 + $0x8] sm:$0xff] %v941
        %1022 = vst [vmem:[%s272 + $0x10] sm:$0xff] %v854
        %1023 = vst [vmem:[%s272 + $0x18] sm:$0xff] %v943
        %1024 = vst [vmem:[%s272 + $0x20] sm:$0xff] %v857
        %1025 = vst [vmem:[%s272 + $0x28] sm:$0xff] %v946
        %1026 = vst [vmem:[%s272 + $0x30] sm:$0xff] %v859
        %1027 = vst [vmem:[%s272 + $0x38] sm:$0xff] %v948
        %1028 = vst [vmem:[%s272 + $0x40] sm:$0xff] %v862
        %1029 = vst [vmem:[%s272 + $0x48] sm:$0xff] %v951
        %1030 = vst [vmem:[%s272 + $0x50] sm:$0xff] %v864
        %1031 = vst [vmem:[%s272 + $0x58] sm:$0xff] %v953
        %1032 = vst [vmem:[%s272 + $0x60] sm:$0xff] %v867
        %1033 = vst [vmem:[%s272 + $0x68] sm:$0xff] %v956
        %1034 = vst [vmem:[%s272 + $0x70] sm:$0xff] %v869
        %1035 = vst [vmem:[%s272 + $0x78] sm:$0xff] %v958
        %1036 = vst [vmem:[%s272 + $0x80] sm:$0xff] %v872
        %1037 = vst [vmem:[%s272 + $0x88] sm:$0xff] %v961
        %1038 = vst [vmem:[%s272 + $0x90] sm:$0xff] %v874
        %1039 = vst [vmem:[%s272 + $0x98] sm:$0xff] %v963
        %1040 = vst [vmem:[%s272 + $0xa0] sm:$0xff] %v877
        %1041 = vst [vmem:[%s272 + $0xa8] sm:$0xff] %v966
        %1042 = vst [vmem:[%s272 + $0xb0] sm:$0xff] %v879
        %1043 = vst [vmem:[%s272 + $0xb8] sm:$0xff] %v968
        %1044 = vst [vmem:[%s272 + $0xc0] sm:$0xff] %v882
        %1045 = vst [vmem:[%s272 + $0xc8] sm:$0xff] %v971
        %1046 = vst [vmem:[%s272 + $0xd0] sm:$0xff] %v884
        %1047 = vst [vmem:[%s272 + $0xd8] sm:$0xff] %v973
        %1048 = vst [vmem:[%s272 + $0xe0] sm:$0xff] %v887
        %1049 = vst [vmem:[%s272 + $0xe8] sm:$0xff] %v976
        %1050 = vst [vmem:[%s272 + $0xf0] sm:$0xff] %v889
        %1051 = vst [vmem:[%s272 + $0xf8] sm:$0xff] %v978
        %1052 = vst [vmem:[%s272 + $0x100] sm:$0xff] %v892
        %1053 = vst [vmem:[%s272 + $0x108] sm:$0xff] %v981
        %1054 = vst [vmem:[%s272 + $0x110] sm:$0xff] %v894
        %1055 = vst [vmem:[%s272 + $0x118] sm:$0xff] %v983
        %1056 = vst [vmem:[%s272 + $0x120] sm:$0xff] %v897
        %1057 = vst [vmem:[%s272 + $0x128] sm:$0xff] %v986
        %1058 = vst [vmem:[%s272 + $0x130] sm:$0xff] %v899
        %1059 = vst [vmem:[%s272 + $0x138] sm:$0xff] %v988
        %1060 = vst [vmem:[%s272 + $0x140] sm:$0xff] %v902
        %1061 = vst [vmem:[%s272 + $0x148] sm:$0xff] %v991
        %1062 = vst [vmem:[%s272 + $0x150] sm:$0xff] %v904
        %1063 = vst [vmem:[%s272 + $0x158] sm:$0xff] %v993
        %1064 = vst [vmem:[%s272 + $0x160] sm:$0xff] %v907
        %1065 = vst [vmem:[%s272 + $0x168] sm:$0xff] %v996
        %1066 = vst [vmem:[%s272 + $0x170] sm:$0xff] %v909
        %1067 = vst [vmem:[%s272 + $0x178] sm:$0xff] %v998
        %1068 = vst [vmem:[%s272 + $0x180] sm:$0xff] %v912
        %1069 = vst [vmem:[%s272 + $0x188] sm:$0xff] %v1001
        %1070 = vst [vmem:[%s272 + $0x190] sm:$0xff] %v914
        %1071 = vst [vmem:[%s272 + $0x198] sm:$0xff] %v1003
        %1072 = vst [vmem:[%s272 + $0x1a0] sm:$0xff] %v917
        %1073 = vst [vmem:[%s272 + $0x1a8] sm:$0xff] %v1006
        %1074 = vst [vmem:[%s272 + $0x1b0] sm:$0xff] %v919
        %1075 = vst [vmem:[%s272 + $0x1b8] sm:$0xff] %v1008
        %1076 = vst [vmem:[%s272 + $0x1c0] sm:$0xff] %v922
        %1077 = vst [vmem:[%s272 + $0x1c8] sm:$0xff] %v1011
        %1078 = vst [vmem:[%s272 + $0x1d0] sm:$0xff] %v924
        %1079 = vst [vmem:[%s272 + $0x1d8] sm:$0xff] %v1013
        %1080 = vst [vmem:[%s272 + $0x1e0] sm:$0xff] %v927
        %1081 = vst [vmem:[%s272 + $0x1e8] sm:$0xff] %v1016
        %1082 = vst [vmem:[%s272 + $0x1f0] sm:$0xff] %v929
        %1083 = vst [vmem:[%s272 + $0x1f8] sm:$0xff] %v1018
        %s1084 = sand.u32 %s181, 1
        %s1085 = scalar_lea.sflag [#allocation3], %s1084
        %s1086 = sand.u32 %s181, 1
        %s1087 = smul.addr %s1086, 512
        %s1088 = scalar_lea.vmem [#allocation2], %s1087
        // Predicated region
        $region49: #{tpu_custom_call.1} parent=47 // pred_check
          %p1089 = pneg %p191
        $region50: #{tpu_custom_call.1} parent=47 // pred_check_branch
          %1091 = sbr.rel (%p1089) target = $region52
        $region51: #{tpu_custom_call.1} parent=47 // pred_region
          %s1092 = smul.u32 32, %s21
          %1094 = vsyncadd %s1085, 0
          %s1095 = smul.addr %s1092, 2
          %s1096 = smul.addr %s1095, 8
          %s1097 = scalar_lea.hbm %s7, %s1096
          %s1098 = sshll.u32 %s1088, 4
          %s1099 = int_to_ptr.vmem [resolvable:$true] %s1098
          %s1100 = sshll.u32 %s1097, 4
          %s1101 = int_to_ptr.hbm [resolvable:$true] %s1100
          %1106 = dma.vmem_to_hbm [thread:$0]  %s1099, 8192, %s1101, %s1085, 256, 256, 16
        $region52: #{tpu_custom_call.1} parent=47 // pred_fallthru
          _
      $region48: #{tpu_custom_call.1} parent=5 // pred_fallthru
        _
      %p1107 = scmp.le.s32.totalorder 2, %s16
      // Predicated region
      $region53: #{tpu_custom_call.1} parent=5 // pred_check
        %p1108 = pneg %p1107
      $region54: #{tpu_custom_call.1} parent=5 // pred_check_branch
        %1110 = sbr.rel (%p1108) target = $region56
      $region55: #{tpu_custom_call.1} parent=5 // pred_region
        %s1111 = ssub.s32 %s16, 2
        // Predicated region
        $region57: #{tpu_custom_call.1} parent=55 // pred_check
          %p1112 = pneg %p197
        $region58: #{tpu_custom_call.1} parent=55 // pred_check_branch
          %1114 = sbr.rel (%p1112) target = $region60
        $region59: #{tpu_custom_call.1} parent=55 // pred_region
          %s1115 = sand.u32 %s182, 1
          %s1116 = scalar_lea.sflag [#allocation3], %s1115
          %s1117 = sand.u32 %s182, 1
          %s1118 = smul.addr %s1117, 512
          %s1119 = scalar_lea.vmem [#allocation2], %s1118
          %1121 = dma.done %s1116, 8192
        $region60: #{tpu_custom_call.1} parent=55 // pred_fallthru
          _
      $region56: #{tpu_custom_call.1} parent=5 // pred_fallthru
        _
    $region6: #{tpu_custom_call.1} parent=1 // loop_footer
      %s20 = sadd.s32 1, %s16
    $region7: #{tpu_custom_call.1} parent=1 // loop_footer_branch
      %15 = sbr.rel target = $region3
    $region8: #{tpu_custom_call.1} parent=1 // loop_exit
      _
    %1122 = vsyncpa [#allocation3], 1
    %s1123 = scalar_lea.sflag [#allocation3], 1
    %1124 = vsyncpa %s1123, 1

</llo_original>
